<compile_context>
chip_gen: v7x
topology: tpu7x:2x2x1
jax: 0.10.0
libtpu: 0.0.40
codegen_flags: <defaults>
</compile_context>

<pallas_src>
import functools

import jax
import jax.numpy as jnp
import numpy as np
from jax.experimental import pallas as pl
from jax.experimental.pallas import tpu as pltpu


# ----------------------------------------------------------------------------
# Kernel 1: per-image gray statistics -> gamma   (tiled reduction over H*W)
# ----------------------------------------------------------------------------
def _make_stats_kernel(n_total: int, g_min: float, g_max: float, eps: float):
    inv_n = 1.0 / float(n_total)
    inv_nm1 = 1.0 / float(max(n_total - 1, 1))

    def kernel(x_ref, gamma_ref, sum_ref, sq_ref):
        # x_ref:     (C, T)   lane-dense tile of one image (HW on lanes)
        # gamma_ref: (1, 1)   per-image gamma (written on the last tile)
        # sum_ref/sq_ref: (1,1) VMEM scratch accumulators (persist across t)
        t = pl.program_id(1)

        @pl.when(t == 0)
        def _init():
            sum_ref[...] = jnp.zeros_like(sum_ref)
            sq_ref[...] = jnp.zeros_like(sq_ref)

        x = x_ref[...]
        gray = (0.299 * x[0:1, :] + 0.587 * x[1:2, :] + 0.114 * x[2:3, :])  # (1, T)
        sum_ref[...] += jnp.sum(gray, axis=-1, keepdims=True)
        sq_ref[...] += jnp.sum(gray * gray, axis=-1, keepdims=True)

        @pl.when(t == pl.num_programs(1) - 1)
        def _finish():
            s = sum_ref[...]                       # (1, 1)
            sq = sq_ref[...]
            mean = s * inv_n
            # unbiased variance (torch.std default, correction=1)
            var = jnp.maximum((sq - s * mean) * inv_nm1, 0.0)
            std = jnp.maximum(jnp.sqrt(var), eps)  # clamp_min(epsilon)
            gamma = g_min + (g_max - g_min) * mean / (mean + std)
            gamma = jnp.clip(gamma, g_min, g_max)
            gamma = jnp.where(jnp.isnan(gamma), g_min, gamma)  # nan_to_num(nan=G_min)
            gamma_ref[...] = gamma

    return kernel


# ----------------------------------------------------------------------------
# Kernel 2: out = (x + eps) ** gamma[b]   (tiled elementwise, gamma from SMEM)
# ----------------------------------------------------------------------------
def _make_apply_kernel(eps: float):
    def kernel(gamma_ref, x_ref, o_ref):
        # gamma_ref: (B,) in SMEM;  x_ref / o_ref: (C, T) lane-dense tiles
        b = pl.program_id(0)
        g = gamma_ref[b]                           # scalar read + splat
        # pow(base, g) for base > 0  (base <= 0 -> NaN/0, matching torch.pow)
        o_ref[...] = jnp.exp(g * jnp.log(x_ref[...] + eps))
    return kernel


# ----------------------------------------------------------------------------
# Tiling helper: largest HW tile that stays lane-dense (multiple of 128) and
# divides HW exactly (avoids masked edge tiles in the reduction).
# ----------------------------------------------------------------------------
def _pick_hw_tile(hw: int, max_tile: int = 4096) -> int:
    if hw <= max_tile:
        return hw
    t = (max_tile // 128) * 128
    while t >= 128:
        if hw % t == 0:
            return t
        t -= 128
    return hw  # fallback: whole row (only if HW has no 128-multiple divisor)


# ----------------------------------------------------------------------------
# Forward
# ----------------------------------------------------------------------------
def sagamma_forward(x_nchw, *, g_min=0.8, g_max=1.2, eps=1e-6, max_hw_tile=4096):
    b, c, h, w = x_nchw.shape
    assert c >= 3, "SAGamma needs at least 3 channels (RGB) for the gray estimate"
    hw = h * w
    xf = x_nchw.reshape(b, c, hw).astype(jnp.float32)

    tile = _pick_hw_tile(hw, max_hw_tile)
    if hw % tile != 0:
        tile = hw
    n_t = hw // tile

    cparams = pltpu.CompilerParams(vmem_limit_bytes=32 * 1024 * 1024)

    # ---- phase 1: per-image gamma -------------------------------------------
    gamma = pl.pallas_call(
        _make_stats_kernel(hw, float(g_min), float(g_max), float(eps)),
        out_shape=jax.ShapeDtypeStruct((b, 1, 1), jnp.float32),
        grid=(b, n_t),
        in_specs=[pl.BlockSpec((None, c, tile), lambda i, t: (i, 0, t))],
        out_specs=pl.BlockSpec((None, 1, 1), lambda i, t: (i, 0, 0)),
        scratch_shapes=[pltpu.VMEM((1, 1), jnp.float32),
                        pltpu.VMEM((1, 1), jnp.float32)],
        compiler_params=pltpu.CompilerParams(
            dimension_semantics=("parallel", "arbitrary"),
            vmem_limit_bytes=32 * 1024 * 1024),
    )(xf)
    gamma_1d = gamma.reshape(b)

    # ---- phase 2: elementwise gamma correction -------------------------------
    out = pl.pallas_call(
        _make_apply_kernel(float(eps)),
        out_shape=jax.ShapeDtypeStruct((b, c, hw), jnp.float32),
        grid=(b, n_t),
        in_specs=[pl.BlockSpec(memory_space=pltpu.MemorySpace.SMEM),
                  pl.BlockSpec((None, c, tile), lambda i, t: (i, 0, t))],
        out_specs=pl.BlockSpec((None, c, tile), lambda i, t: (i, 0, t)),
        compiler_params=pltpu.CompilerParams(
            dimension_semantics=("parallel", "parallel"),
            vmem_limit_bytes=32 * 1024 * 1024),
    )(gamma_1d, xf)

    return out.reshape(b, c, h, w)


# ----------------------------------------------------------------------------
# Pure-JAX reference (same math) for correctness checking
# ----------------------------------------------------------------------------
def ref_forward(x_nchw, *, g_min=0.8, g_max=1.2, eps=1e-6):
    x = x_nchw.astype(jnp.float32)
    gray = 0.299 * x[:, 0] + 0.587 * x[:, 1] + 0.114 * x[:, 2]          # (B,H,W)
    mean = jnp.mean(gray, axis=(1, 2), keepdims=True)                   # (B,1,1)
    std = jnp.maximum(jnp.std(gray, axis=(1, 2), keepdims=True, ddof=1), eps)
    gamma = g_min + (g_max - g_min) * mean / (mean + std)
    gamma = jnp.clip(gamma, g_min, g_max)
    gamma = jnp.where(jnp.isnan(gamma), g_min, gamma)                   # nan_to_num
    return jnp.power(x + eps, gamma[:, None])                           # (B,1,1,1) bcast


if __name__ == "__main__":
    key = jax.random.PRNGKey(0)
    b, c, h, w = 2, 4, 16, 16
    # image-like data in [0, 1] (pow of negative base would be NaN, as in torch)
    x = jax.random.uniform(key, (b, c, h, w), jnp.float32)

    fwd = jax.jit(functools.partial(sagamma_forward))
    out = jax.block_until_ready(fwd(x))
    assert out.shape == (b, c, h, w), out.shape

    ref = jax.block_until_ready(ref_forward(x))
    np.testing.assert_allclose(np.asarray(out), np.asarray(ref), rtol=1e-4, atol=1e-5)

    print("KERNEL_OK")
</pallas_src>

<mosaic_0001>
module attributes {stable_mosaic.version = 11 : i64} {
  func.func @kernel(%arg0: i32, %arg1: i32, %arg2: memref<2xf32, #tpu.memory_space<smem>>, %arg3: memref<1x4x256xf32, #tpu.memory_space<vmem>>, %arg4: memref<1x4x256xf32, #tpu.memory_space<vmem>>) attributes {dimension_semantics = [#tpu.dimension_semantics<parallel>, #tpu.dimension_semantics<parallel>], iteration_bounds = array<i64: 2, 1>, scalar_prefetch = 0 : i64, scratch_operands = 0 : i64, tpu.core_type = #tpu.core_type<tc>, window_params = [{transform_indices = @transform_0, window_bounds = array<i64: 2>}, {transform_indices = @transform_1, window_bounds = array<i64: 1, 4, 256>}, {transform_indices = @transform_2, window_bounds = array<i64: 1, 4, 256>}]} {
    %0 = arith.index_cast %arg0 : i32 to index
    %1 = memref.load %arg2[%0] : memref<2xf32, #tpu.memory_space<smem>>
    %c0 = arith.constant 0 : index
    %c0_0 = arith.constant 0 : index
    %c0_1 = arith.constant 0 : index
    %2 = vector.load %arg3[%c0, %c0_0, %c0_1] : memref<1x4x256xf32, #tpu.memory_space<vmem>>, vector<1x4x256xf32>
    %3 = vector.shape_cast %2 : vector<1x4x256xf32> to vector<4x256xf32>
    %cst = arith.constant 9.99999997E-7 : f32
    %4 = vector.broadcast %cst : f32 to vector<4x256xf32>
    %5 = arith.addf %3, %4 : vector<4x256xf32>
    %6 = math.log %5 : vector<4x256xf32>
    %7 = vector.broadcast %1 : f32 to vector<4x256xf32>
    %8 = arith.mulf %7, %6 : vector<4x256xf32>
    %9 = math.exp %8 : vector<4x256xf32>
    %c0_2 = arith.constant 0 : index
    %c0_3 = arith.constant 0 : index
    %c0_4 = arith.constant 0 : index
    %10 = vector.load %arg4[%c0_2, %c0_3, %c0_4] : memref<1x4x256xf32, #tpu.memory_space<vmem>>, vector<1x4x256xf32>
    %11 = vector.shape_cast %10 : vector<1x4x256xf32> to vector<4x256xf32>
    %12 = vector.shape_cast %9 : vector<4x256xf32> to vector<1x4x256xf32>
    tpu.vector_store %arg4[%c0_2, %c0_3, %c0_4], %12 {strides = array<i32>} : memref<1x4x256xf32, #tpu.memory_space<vmem>>, vector<1x4x256xf32>,
    return
  }
  func.func @transform_0(%arg0: i32, %arg1: i32) -> i32 {
    %c0_i32 = arith.constant 0 : i32
    %c0_i32_0 = arith.constant 0 : i32
    return %c0_i32 : i32
  }
  func.func @transform_1(%arg0: i32, %arg1: i32) -> (i32, i32, i32) {
    %c0_i32 = arith.constant 0 : i32
    %c0_i32_0 = arith.constant 0 : i32
    return %arg0, %c0_i32, %arg1 : i32, i32, i32
  }
  func.func @transform_2(%arg0: i32, %arg1: i32) -> (i32, i32, i32) {
    %c0_i32 = arith.constant 0 : i32
    %c0_i32_0 = arith.constant 0 : i32
    return %arg0, %c0_i32, %arg1 : i32, i32, i32
  }
}

module attributes {stable_mosaic.version = 11 : i64} {
  func.func @kernel(%arg0: i32, %arg1: i32, %arg2: memref<1x4x256xf32, #tpu.memory_space<vmem>>, %arg3: memref<1x1x1xf32, #tpu.memory_space<vmem>>, %arg4: memref<1x1xf32, #tpu.memory_space<vmem>>, %arg5: memref<1x1xf32, #tpu.memory_space<vmem>>) attributes {dimension_semantics = [#tpu.dimension_semantics<parallel>, #tpu.dimension_semantics<arbitrary>], iteration_bounds = array<i64: 2, 1>, scalar_prefetch = 0 : i64, scratch_operands = 2 : i64, tpu.core_type = #tpu.core_type<tc>, window_params = [{transform_indices = @transform_0, window_bounds = array<i64: 1, 4, 256>}, {transform_indices = @transform_1, window_bounds = array<i64: 1, 1, 1>}]} {
    %c0_i32 = arith.constant 0 : i32
    %0 = arith.cmpi eq, %arg1, %c0_i32 : i32
    %1 = arith.extui %0 : i1 to i32
    %c0_i32_0 = arith.constant 0 : i32
    %2 = arith.cmpi ne, %1, %c0_i32_0 : i32
    scf.if %2 {
      %cst_17 = arith.constant 0.000000e+00 : f32
      %30 = vector.broadcast %cst_17 : f32 to vector<1x1xf32>
      %c0_18 = arith.constant 0 : index
      %c0_19 = arith.constant 0 : index
      %31 = vector.load %arg4[%c0_18, %c0_19] : memref<1x1xf32, #tpu.memory_space<vmem>>, vector<1x1xf32>
      tpu.vector_store %arg4[%c0_18, %c0_19], %30 {strides = array<i32>} : memref<1x1xf32, #tpu.memory_space<vmem>>, vector<1x1xf32>,
      %cst_20 = arith.constant 0.000000e+00 : f32
      %32 = vector.broadcast %cst_20 : f32 to vector<1x1xf32>
      %c0_21 = arith.constant 0 : index
      %c0_22 = arith.constant 0 : index
      %33 = vector.load %arg5[%c0_21, %c0_22] : memref<1x1xf32, #tpu.memory_space<vmem>>, vector<1x1xf32>
      tpu.vector_store %arg5[%c0_21, %c0_22], %32 {strides = array<i32>} : memref<1x1xf32, #tpu.memory_space<vmem>>, vector<1x1xf32>,
    } else {
    }
    %c0 = arith.constant 0 : index
    %c0_1 = arith.constant 0 : index
    %c0_2 = arith.constant 0 : index
    %3 = vector.load %arg2[%c0, %c0_1, %c0_2] : memref<1x4x256xf32, #tpu.memory_space<vmem>>, vector<1x4x256xf32>
    %4 = vector.shape_cast %3 : vector<1x4x256xf32> to vector<4x256xf32>
    %5 = vector.extract_strided_slice %4 {offsets = [0, 0], sizes = [1, 256], strides = [1, 1]} : vector<4x256xf32> to vector<1x256xf32>
    %cst = arith.constant 2.990000e-01 : f32
    %6 = vector.broadcast %cst : f32 to vector<1x256xf32>
    %7 = arith.mulf %6, %5 : vector<1x256xf32>
    %8 = vector.extract_strided_slice %4 {offsets = [1, 0], sizes = [1, 256], strides = [1, 1]} : vector<4x256xf32> to vector<1x256xf32>
    %cst_3 = arith.constant 5.870000e-01 : f32
    %9 = vector.broadcast %cst_3 : f32 to vector<1x256xf32>
    %10 = arith.mulf %9, %8 : vector<1x256xf32>
    %11 = arith.addf %7, %10 : vector<1x256xf32>
    %12 = vector.extract_strided_slice %4 {offsets = [2, 0], sizes = [1, 256], strides = [1, 1]} : vector<4x256xf32> to vector<1x256xf32>
    %cst_4 = arith.constant 1.140000e-01 : f32
    %13 = vector.broadcast %cst_4 : f32 to vector<1x256xf32>
    %14 = arith.mulf %13, %12 : vector<1x256xf32>
    %15 = arith.addf %11, %14 : vector<1x256xf32>
    %c0_5 = arith.constant 0 : index
    %c0_6 = arith.constant 0 : index
    %16 = vector.load %arg4[%c0_5, %c0_6] : memref<1x1xf32, #tpu.memory_space<vmem>>, vector<1x1xf32>
    %cst_7 = arith.constant dense<0.000000e+00> : vector<1xf32>
    %17 = vector.multi_reduction <add>, %15, %cst_7 [1] : vector<1x256xf32> to vector<1xf32>
    %18 = vector.shape_cast %17 : vector<1xf32> to vector<1x1xf32>
    %19 = arith.addf %16, %18 : vector<1x1xf32>
    %c0_8 = arith.constant 0 : index
    %c0_9 = arith.constant 0 : index
    %20 = vector.load %arg4[%c0_8, %c0_9] : memref<1x1xf32, #tpu.memory_space<vmem>>, vector<1x1xf32>
    tpu.vector_store %arg4[%c0_8, %c0_9], %19 {strides = array<i32>} : memref<1x1xf32, #tpu.memory_space<vmem>>, vector<1x1xf32>,
    %c0_10 = arith.constant 0 : index
    %c0_11 = arith.constant 0 : index
    %21 = vector.load %arg5[%c0_10, %c0_11] : memref<1x1xf32, #tpu.memory_space<vmem>>, vector<1x1xf32>
    %22 = arith.mulf %15, %15 : vector<1x256xf32>
    %cst_12 = arith.constant dense<0.000000e+00> : vector<1xf32>
    %23 = vector.multi_reduction <add>, %22, %cst_12 [1] : vector<1x256xf32> to vector<1xf32>
    %24 = vector.shape_cast %23 : vector<1xf32> to vector<1x1xf32>
    %25 = arith.addf %21, %24 : vector<1x1xf32>
    %c0_13 = arith.constant 0 : index
    %c0_14 = arith.constant 0 : index
    %26 = vector.load %arg5[%c0_13, %c0_14] : memref<1x1xf32, #tpu.memory_space<vmem>>, vector<1x1xf32>
    tpu.vector_store %arg5[%c0_13, %c0_14], %25 {strides = array<i32>} : memref<1x1xf32, #tpu.memory_space<vmem>>, vector<1x1xf32>,
    %c0_i32_15 = arith.constant 0 : i32
    %27 = arith.cmpi eq, %arg1, %c0_i32_15 : i32
    %28 = arith.extui %27 : i1 to i32
    %c0_i32_16 = arith.constant 0 : i32
    %29 = arith.cmpi ne, %28, %c0_i32_16 : i32
    scf.if %29 {
      %c0_17 = arith.constant 0 : index
      %c0_18 = arith.constant 0 : index
      %30 = vector.load %arg4[%c0_17, %c0_18] : memref<1x1xf32, #tpu.memory_space<vmem>>, vector<1x1xf32>
      %c0_19 = arith.constant 0 : index
      %c0_20 = arith.constant 0 : index
      %31 = vector.load %arg5[%c0_19, %c0_20] : memref<1x1xf32, #tpu.memory_space<vmem>>, vector<1x1xf32>
      %cst_21 = arith.constant 3.906250e-03 : f32
      %32 = vector.broadcast %cst_21 : f32 to vector<1x1xf32>
      %33 = arith.mulf %30, %32 : vector<1x1xf32>
      %34 = arith.mulf %30, %33 : vector<1x1xf32>
      %35 = arith.subf %31, %34 : vector<1x1xf32>
      %cst_22 = arith.constant 0.00392156886 : f32
      %36 = vector.broadcast %cst_22 : f32 to vector<1x1xf32>
      %37 = arith.mulf %35, %36 : vector<1x1xf32>
      %cst_23 = arith.constant 0.000000e+00 : f32
      %38 = vector.broadcast %cst_23 : f32 to vector<1x1xf32>
      %39 = arith.maximumf %37, %38 : vector<1x1xf32>
      %40 = math.sqrt %39 : vector<1x1xf32>
      %cst_24 = arith.constant 9.99999997E-7 : f32
      %41 = vector.broadcast %cst_24 : f32 to vector<1x1xf32>
      %42 = arith.maximumf %40, %41 : vector<1x1xf32>
      %cst_25 = arith.constant 4.000000e-01 : f32
      %43 = vector.broadcast %cst_25 : f32 to vector<1x1xf32>
      %44 = arith.mulf %43, %33 : vector<1x1xf32>
      %45 = arith.addf %33, %42 : vector<1x1xf32>
      %46 = arith.divf %44, %45 : vector<1x1xf32>
      %cst_26 = arith.constant 8.000000e-01 : f32
      %47 = vector.broadcast %cst_26 : f32 to vector<1x1xf32>
      %48 = arith.addf %47, %46 : vector<1x1xf32>
      %cst_27 = arith.constant 8.000000e-01 : f32
      %cst_28 = arith.constant 1.200000e+00 : f32
      %49 = vector.broadcast %cst_27 : f32 to vector<1x1xf32>
      %50 = arith.maximumf %49, %48 : vector<1x1xf32>
      %51 = vector.broadcast %cst_28 : f32 to vector<1x1xf32>
      %52 = arith.minimumf %51, %50 : vector<1x1xf32>
      %53 = arith.cmpf one, %52, %52 : vector<1x1xf32>
      %cst_29 = arith.constant 8.000000e-01 : f32
      %54 = vector.broadcast %cst_29 : f32 to vector<1x1xf32>
      %55 = arith.select %53, %54, %52 : vector<1x1xi1>, vector<1x1xf32>
      %c0_30 = arith.constant 0 : index
      %c0_31 = arith.constant 0 : index
      %c0_32 = arith.constant 0 : index
      %56 = vector.load %arg3[%c0_30, %c0_31, %c0_32] : memref<1x1x1xf32, #tpu.memory_space<vmem>>, vector<1x1x1xf32>
      %57 = vector.shape_cast %56 : vector<1x1x1xf32> to vector<1x1xf32>
      %58 = vector.shape_cast %55 : vector<1x1xf32> to vector<1x1x1xf32>
      tpu.vector_store %arg3[%c0_30, %c0_31, %c0_32], %58 {strides = array<i32>} : memref<1x1x1xf32, #tpu.memory_space<vmem>>, vector<1x1x1xf32>,
    } else {
    }
    return
  }
  func.func @transform_0(%arg0: i32, %arg1: i32) -> (i32, i32, i32) {
    %c0_i32 = arith.constant 0 : i32
    %c0_i32_0 = arith.constant 0 : i32
    return %arg0, %c0_i32, %arg1 : i32, i32, i32
  }
  func.func @transform_1(%arg0: i32, %arg1: i32) -> (i32, i32, i32) {
    %c0_i32 = arith.constant 0 : i32
    %c0_i32_0 = arith.constant 0 : i32
    %c0_i32_1 = arith.constant 0 : i32
    return %arg0, %c0_i32, %c0_i32_0 : i32, i32, i32
  }
}

</mosaic_0001>

<llo_original>
// kernel: sagamma_forward.3
$region0: #{sagamma_forward.3}
  #allocation0 [shape = 'u32[]', space=smem, size = 0x4, offset = 0x4, fixed_abs, tag = 'smem constant byte address 0x4 - core index']
  #allocation1 [shape = 'u32[144,128]{1,0:T(1,128)}', space=vmem, size = 0x12000, scoped, tag = 'internal scratch']
  %s0 = inlined_call_operand.vmem [shape: f32[2], index: 0, kind: input, shape index: {}]
  %s1 = inlined_call_operand.vmem [shape: f32[2,4,256], index: 1, kind: input, shape index: {}]
  %s2 = inlined_call_operand.vmem [shape: f32[2,4,256], index: 2, kind: output, shape index: {}]
  %s3 = sld [smem:[#allocation0]]
  $region45: #{sagamma_forward.3} parent=0
    _
  %s5 = ssub.s32 1, %s3
  %s6 = scalar_select 0, %s5, %s3
  $region1: #{sagamma_forward.3} parent=0
    #allocation2 [shape = 'u8[512]{0}', space=smem, size = 0x200, scoped, tag = 'input window, operand 0, single buffered']
    #allocation3 [shape = 's32[2]{0}', space=sflag, size = 0x8, scoped, tag = 'scoped memory for sagamma_forward.3']
    %7 = vsyncpa [#allocation3], 0
    loop: start=0, step=1, limit=4
    $region2: #{sagamma_forward.3} parent=1 // loop_pre_header
      _
    $region3: #{sagamma_forward.3} parent=1 // loop_header
      %s9 = sphi 0, %s13
      %p10 = scmp.ge.s32.totalorder %s9, 4
      %s16 = sphi 0, %s28
      %s17 = sphi 0, %s24
      %s18 = sphi 0, %s16
      %s19 = sphi 0, %s17
      %s20 = sphi 0, %s18
      %s21 = sphi 0, %s19
      %s29 = sphi 0, %s29
      %s31 = sphi 0, %s29
      %s32 = sphi 0, %s31
      %s46 = sphi 0, %s32
      %s54 = sphi 0, %s56
      %s57 = sphi 0, %s54
      %s58 = sphi 0, %s57
      %s74 = sphi 0, %s58
      %s82 = sphi 0, %s84
      %s85 = sphi 0, %s82
      %s86 = sphi 0, %s85
      %s102 = sphi 0, %s86
    $region4: #{sagamma_forward.3} parent=1 // loop_header_branch
      %12 = sbr.rel (%p10) target = $region8
    $region5: #{sagamma_forward.3} parent=1 // loop_body
      %s14 = ssub.s32 %s9, 1
      %s15 = ssub.s32 %s9, 2
      %s22 = sadd.s32 1, %s17
      %p23 = scmp.ge.s32.totalorder %s22, 1
      %s24 = scalar_select %p23, 0, %s22
      %s25 = sadd.s32 1, %s16
      %s26 = scalar_select %p23, %s25, %s16
      %p27 = scmp.ge.s32.totalorder %s26, 2
      %s28 = scalar_select %p27, 0, %s26
      %s30 = sadd.s32 %s29, 1
      %p33 = scmp.eq.s32.totalorder %s9, 1
      %p34 = scmp.ne.s32.totalorder %s29, %s31
      %p35 = scmp.eq.s32.totalorder %s9, 0
      %p36 = por %p34, %p35
      %p37 = scmp.ne.s32.totalorder %s29, %s31
      %p38 = scmp.eq.s32.totalorder %s14, 1
      %p39 = por %p37, %p38
      %p40 = scmp.ne.s32.totalorder %s31, %s32
      %p41 = scmp.eq.s32.totalorder %s14, 0
      %p42 = por %p40, %p41
      %p43 = scmp.ne.s32.totalorder %s31, %s32
      %p44 = scmp.eq.s32.totalorder %s15, 1
      %p45 = por %p43, %p44
      %p47 = scmp.ne.s32.totalorder %s32, %s46
      %p48 = scmp.eq.s32.totalorder %s15, 0
      %p49 = por %p47, %p48
      %s50 = ssub.s32 %s16, %s28
      %s51 = ssub.s32 %s17, %s24
      %s52 = sor.u32 %s50, %s51
      %p53 = scmp.eq.s32.totalorder %s52, 0
      %s55 = sadd.s32 %s54, 1
      %s56 = scalar_select %p53, %s54, %s55
      %p59 = pneg %p53
      %p60 = scmp.eq.s32.totalorder %s9, 1
      %p61 = por %p59, %p60
      %p62 = scmp.ne.s32.totalorder %s54, %s57
      %p63 = scmp.eq.s32.totalorder %s9, 0
      %p64 = por %p62, %p63
      %p65 = scmp.ne.s32.totalorder %s54, %s57
      %p66 = scmp.eq.s32.totalorder %s14, 1
      %p67 = por %p65, %p66
      %p68 = scmp.ne.s32.totalorder %s57, %s58
      %p69 = scmp.eq.s32.totalorder %s14, 0
      %p70 = por %p68, %p69
      %p71 = scmp.ne.s32.totalorder %s57, %s58
      %p72 = scmp.eq.s32.totalorder %s15, 1
      %p73 = por %p71, %p72
      %p75 = scmp.ne.s32.totalorder %s58, %s74
      %p76 = scmp.eq.s32.totalorder %s15, 0
      %p77 = por %p75, %p76
      %s78 = ssub.s32 %s16, %s28
      %s79 = ssub.s32 %s17, %s24
      %s80 = sor.u32 %s78, %s79
      %p81 = scmp.eq.s32.totalorder %s80, 0
      %s83 = sadd.s32 %s82, 1
      %s84 = scalar_select %p81, %s82, %s83
      %p87 = pneg %p81
      %p88 = scmp.eq.s32.totalorder %s9, 1
      %p89 = por %p87, %p88
      %p90 = scmp.ne.s32.totalorder %s82, %s85
      %p91 = scmp.eq.s32.totalorder %s9, 0
      %p92 = por %p90, %p91
      %p93 = scmp.ne.s32.totalorder %s82, %s85
      %p94 = scmp.eq.s32.totalorder %s14, 1
      %p95 = por %p93, %p94
      %p96 = scmp.ne.s32.totalorder %s85, %s86
      %p97 = scmp.eq.s32.totalorder %s14, 0
      %p98 = por %p96, %p97
      %p99 = scmp.ne.s32.totalorder %s85, %s86
      %p100 = scmp.eq.s32.totalorder %s15, 1
      %p101 = por %p99, %p100
      %p103 = scmp.ne.s32.totalorder %s86, %s102
      %p104 = scmp.eq.s32.totalorder %s15, 0
      %p105 = por %p103, %p104
      %p106 = scmp.le.s32.totalorder 1, %s9
      %p107 = scmp.lt.s32.totalorder %s9, 3
      %p108 = pnand %p106, %p107
      %p109 = pneg %p108
      // Predicated region
      $region9: #{sagamma_forward.3} parent=5 // pred_check
        _
      $region10: #{sagamma_forward.3} parent=5 // pred_check_branch
        %111 = sbr.rel (%p108) target = $region12
      $region11: #{sagamma_forward.3} parent=5 // pred_region
        %s112 = ssub.s32 %s9, 1
        // Predicated region
        $region13: #{sagamma_forward.3} parent=11 // pred_check
          %p113 = pneg %p42
        $region14: #{sagamma_forward.3} parent=11 // pred_check_branch
          %115 = sbr.rel (%p113) target = $region16
        $region15: #{sagamma_forward.3} parent=11 // pred_region
          %s117 = ssub.s32 16, 16
          %118 = vsyncadd [#allocation3], %s117
          %s120 = sshll.u32 %s0, 4
          %s121 = int_to_ptr.vmem [resolvable:$true] %s120
          %123 = dma.vmem_to_smem %s121, 16, [#allocation2], [#allocation3]
        $region16: #{sagamma_forward.3} parent=11 // pred_fallthru
          _
      $region12: #{sagamma_forward.3} parent=5 // pred_fallthru
        _
      %p124 = scmp.lt.s32.totalorder %s9, 2
      // Predicated region
      $region17: #{sagamma_forward.3} parent=5 // pred_check
        %p125 = pneg %p124
      $region18: #{sagamma_forward.3} parent=5 // pred_check_branch
        %127 = sbr.rel (%p125) target = $region20
      $region19: #{sagamma_forward.3} parent=5 // pred_region
        // Predicated region
        $region21: #{sagamma_forward.3} parent=19 // pred_check
          %p128 = pneg %p64
        $region22: #{sagamma_forward.3} parent=19 // pred_check_branch
          %130 = sbr.rel (%p128) target = $region24
        $region23: #{sagamma_forward.3} parent=19 // pred_region
          %s131 = smul.u32 2, %s17
          %p132 = scmp.lt.s32.totalorder %s16, 1
          %s133 = scalar_select %p132, %s16, 1
          %p134 = scmp.lt.s32.totalorder %s131, 1
          %s135 = scalar_select %p134, %s131, 1
          %s136 = smul.addr %s133, 2
          %s137 = sadd.s32 %s135, %s136
          %s138 = smul.addr %s137, 4
          %s139 = scalar_lea.vmem %s1, %s138
          %s140 = smul.u32 2, %s17
        $region24: #{sagamma_forward.3} parent=19 // pred_fallthru
          _
      $region20: #{sagamma_forward.3} parent=5 // pred_fallthru
        _
      %p141 = scmp.le.s32.totalorder 1, %s9
      %p142 = scmp.lt.s32.totalorder %s9, 3
      %p143 = pnand %p141, %p142
      %p144 = pneg %p143
      // Predicated region
      $region25: #{sagamma_forward.3} parent=5 // pred_check
        _
      $region26: #{sagamma_forward.3} parent=5 // pred_check_branch
        %146 = sbr.rel (%p143) target = $region28
      $region27: #{sagamma_forward.3} parent=5 // pred_region
        %s147 = ssub.s32 %s9, 1
        // Predicated region
        $region29: #{sagamma_forward.3} parent=27 // pred_check
          %p148 = pneg %p42
        $region30: #{sagamma_forward.3} parent=27 // pred_check_branch
          %150 = sbr.rel (%p148) target = $region32
        $region31: #{sagamma_forward.3} parent=27 // pred_region
          %151 = dma.done [#allocation3], 16
        $region32: #{sagamma_forward.3} parent=27 // pred_fallthru
          _
        %152 = sfence
        %p153 = pneg %p42
        %p154 = pneg %p39
        %s155 = smul.u32 2, %s19
        %p156 = scmp.lt.s32.totalorder %s18, 1
        %s157 = scalar_select %p156, %s18, 1
        %p158 = scmp.lt.s32.totalorder %s155, 1
        %s159 = scalar_select %p158, %s155, 1
        %s160 = smul.addr %s157, 2
        %s161 = sadd.s32 %s159, %s160
        %s162 = smul.addr %s161, 4
        %s163 = scalar_lea.vmem %s1, %s162
        %p164 = pneg %p70
        %p165 = pneg %p67
        %p166 = pneg %p98
        %p167 = pneg %p95
        %s168 = smul.u32 2, %s19
        %p169 = scmp.lt.s32.totalorder %s18, 1
        %s170 = scalar_select %p169, %s18, 1
        %p171 = scmp.lt.s32.totalorder %s168, 1
        %s172 = scalar_select %p171, %s168, 1
        %s173 = smul.addr %s170, 2
        %s174 = sadd.s32 %s172, %s173
        %s175 = smul.addr %s174, 4
        %s176 = scalar_lea.vmem %s2, %s175
        %s177 = smul.u32 2, %s19
        %p178 = scmp.lt.s32.totalorder %s18, 1
        %s179 = scalar_select %p178, %s18, 1
        %p180 = scmp.lt.s32.totalorder %s177, 1
        %s181 = scalar_select %p180, %s177, 1
        %s182 = smul.addr %s179, 2
        %s183 = sadd.s32 %s181, %s182
        %s184 = smul.addr %s183, 4
        %s185 = scalar_lea.vmem %s1, %s184
        %s186 = smul.u32 2, %s19
        %s187 = smul.u32 2, %s19
        %p188 = scmp.lt.s32.totalorder %s18, 1
        %s189 = scalar_select %p188, %s18, 1
        %p190 = scmp.lt.s32.totalorder %s187, 1
        %s191 = scalar_select %p190, %s187, 1
        %s192 = smul.addr %s189, 2
        %s193 = sadd.s32 %s191, %s192
        %s194 = smul.addr %s193, 4
        %s195 = scalar_lea.vmem %s2, %s194
        %s196 = smul.u32 2, %s19
        %s197 = sld [smem:[#allocation2 + %s18]]
        %v198 = vld [vmem:[%s185] sm:$0xff]
        %v199 = vadd.f32 %v198, 1e-06
        %v200 = vlog2.pop %v199
        %v201 = vmul.f32 %v200, 0.6931472
        %v202 = vstv %s197
        %v203 = vmul.f32 %v202, %v201
        %v204 = vmul.f32 %v203, 1.442695
        %v205 = vpow.pop %v204
        %206 = vst [vmem:[%s195] sm:$0xff] %v205
        %s207 = smul.u32 2, %s19
        %p208 = scmp.lt.s32.totalorder %s18, 1
        %s209 = scalar_select %p208, %s18, 1
        %p210 = scmp.lt.s32.totalorder %s207, 1
        %s211 = scalar_select %p210, %s207, 1
        %s212 = smul.addr %s209, 2
        %s213 = sadd.s32 %s211, %s212
        %s214 = smul.addr %s213, 4
        %s215 = scalar_lea.vmem %s2, %s214
        // Predicated region
        $region33: #{sagamma_forward.3} parent=27 // pred_check
          %p216 = pneg %p95
        $region34: #{sagamma_forward.3} parent=27 // pred_check_branch
          %218 = sbr.rel (%p216) target = $region36
        $region35: #{sagamma_forward.3} parent=27 // pred_region
          %s219 = smul.u32 2, %s19
        $region36: #{sagamma_forward.3} parent=27 // pred_fallthru
          _
      $region28: #{sagamma_forward.3} parent=5 // pred_fallthru
        _
      %p220 = scmp.le.s32.totalorder 2, %s9
      // Predicated region
      $region37: #{sagamma_forward.3} parent=5 // pred_check
        %p221 = pneg %p220
      $region38: #{sagamma_forward.3} parent=5 // pred_check_branch
        %223 = sbr.rel (%p221) target = $region40
      $region39: #{sagamma_forward.3} parent=5 // pred_region
        %s224 = ssub.s32 %s9, 2
        // Predicated region
        $region41: #{sagamma_forward.3} parent=39 // pred_check
          %p225 = pneg %p101
        $region42: #{sagamma_forward.3} parent=39 // pred_check_branch
          %227 = sbr.rel (%p225) target = $region44
        $region43: #{sagamma_forward.3} parent=39 // pred_region
          %s228 = smul.u32 2, %s21
          %p229 = scmp.lt.s32.totalorder %s20, 1
          %s230 = scalar_select %p229, %s20, 1
          %p231 = scmp.lt.s32.totalorder %s228, 1
          %s232 = scalar_select %p231, %s228, 1
          %s233 = smul.addr %s230, 2
          %s234 = sadd.s32 %s232, %s233
          %s235 = smul.addr %s234, 4
          %s236 = scalar_lea.vmem %s2, %s235
        $region44: #{sagamma_forward.3} parent=39 // pred_fallthru
          _
      $region40: #{sagamma_forward.3} parent=5 // pred_fallthru
        _
    $region6: #{sagamma_forward.3} parent=1 // loop_footer
      %s13 = sadd.s32 1, %s9
    $region7: #{sagamma_forward.3} parent=1 // loop_footer_branch
      %8 = sbr.rel target = $region3
    $region8: #{sagamma_forward.3} parent=1 // loop_exit
      _
    %237 = vsyncpa [#allocation3], 1
    %s238 = scalar_lea.sflag [#allocation3], 1
    %239 = vsyncpa %s238, 1

// kernel: sagamma_forward.2
$region0: #{sagamma_forward.2}
  #allocation0 [shape = 'u32[]', space=smem, size = 0x4, offset = 0x4, fixed_abs, tag = 'smem constant byte address 0x4 - core index']
  #allocation1 [shape = 'u32[144,128]{1,0:T(1,128)}', space=vmem, size = 0x12000, scoped, tag = 'internal scratch']
  #allocation2 [shape = 'f32[1,1]{1,0:T(1,128)}', space=vmem, size = 0x200, scoped, tag = 'scratch operand']
  #allocation3 [shape = 'f32[1,1]{1,0:T(1,128)}', space=vmem, size = 0x200, scoped, tag = 'scratch operand']
  %s0 = inlined_call_operand.vmem [shape: f32[2,4,256], index: 0, kind: input, shape index: {}]
  %s1 = inlined_call_operand.vmem [shape: f32[2,1,1], index: 1, kind: output, shape index: {}]
  %s2 = sld [smem:[#allocation0]]
  $region45: #{sagamma_forward.2} parent=0
    _
  %s4 = ssub.s32 1, %s2
  %s5 = scalar_select 0, %s4, %s2
  loop: start=0, step=1, limit=4
  $region2: #{sagamma_forward.2} parent=0 // loop_pre_header
    _
  $region3: #{sagamma_forward.2} parent=0 // loop_header
    %s7 = sphi 0, %s11
    %p8 = scmp.ge.s32.totalorder %s7, 4
    %s14 = sphi 0, %s26
    %s15 = sphi 0, %s22
    %s16 = sphi 0, %s14
    %s17 = sphi 0, %s15
    %s18 = sphi 0, %s16
    %s19 = sphi 0, %s17
    %s31 = sphi 0, %s33
    %s34 = sphi 0, %s31
    %s35 = sphi 0, %s34
    %s51 = sphi 0, %s35
    %s57 = sphi 0, %s59
    %s60 = sphi 0, %s57
    %s61 = sphi 0, %s60
    %s77 = sphi 0, %s61
  $region4: #{sagamma_forward.2} parent=0 // loop_header_branch
    %10 = sbr.rel (%p8) target = $region8
  $region5: #{sagamma_forward.2} parent=0 // loop_body
    %s12 = ssub.s32 %s7, 1
    %s13 = ssub.s32 %s7, 2
    %s20 = sadd.s32 1, %s15
    %p21 = scmp.ge.s32.totalorder %s20, 1
    %s22 = scalar_select %p21, 0, %s20
    %s23 = sadd.s32 1, %s14
    %s24 = scalar_select %p21, %s23, %s14
    %p25 = scmp.ge.s32.totalorder %s24, 2
    %s26 = scalar_select %p25, 0, %s24
    %s27 = ssub.s32 %s14, %s26
    %s28 = ssub.s32 %s15, %s22
    %s29 = sor.u32 %s27, %s28
    %p30 = scmp.eq.s32.totalorder %s29, 0
    %s32 = sadd.s32 %s31, 1
    %s33 = scalar_select %p30, %s31, %s32
    %p36 = pneg %p30
    %p37 = scmp.eq.s32.totalorder %s7, 1
    %p38 = por %p36, %p37
    %p39 = scmp.ne.s32.totalorder %s31, %s34
    %p40 = scmp.eq.s32.totalorder %s7, 0
    %p41 = por %p39, %p40
    %p42 = scmp.ne.s32.totalorder %s31, %s34
    %p43 = scmp.eq.s32.totalorder %s12, 1
    %p44 = por %p42, %p43
    %p45 = scmp.ne.s32.totalorder %s34, %s35
    %p46 = scmp.eq.s32.totalorder %s12, 0
    %p47 = por %p45, %p46
    %p48 = scmp.ne.s32.totalorder %s34, %s35
    %p49 = scmp.eq.s32.totalorder %s13, 1
    %p50 = por %p48, %p49
    %p52 = scmp.ne.s32.totalorder %s35, %s51
    %p53 = scmp.eq.s32.totalorder %s13, 0
    %p54 = por %p52, %p53
    %s55 = ssub.s32 %s14, %s26
    %p56 = scmp.eq.s32.totalorder %s55, 0
    %s58 = sadd.s32 %s57, 1
    %s59 = scalar_select %p56, %s57, %s58
    %p62 = pneg %p56
    %p63 = scmp.eq.s32.totalorder %s7, 1
    %p64 = por %p62, %p63
    %p65 = scmp.ne.s32.totalorder %s57, %s60
    %p66 = scmp.eq.s32.totalorder %s7, 0
    %p67 = por %p65, %p66
    %p68 = scmp.ne.s32.totalorder %s57, %s60
    %p69 = scmp.eq.s32.totalorder %s12, 1
    %p70 = por %p68, %p69
    %p71 = scmp.ne.s32.totalorder %s60, %s61
    %p72 = scmp.eq.s32.totalorder %s12, 0
    %p73 = por %p71, %p72
    %p74 = scmp.ne.s32.totalorder %s60, %s61
    %p75 = scmp.eq.s32.totalorder %s13, 1
    %p76 = por %p74, %p75
    %p78 = scmp.ne.s32.totalorder %s61, %s77
    %p79 = scmp.eq.s32.totalorder %s13, 0
    %p80 = por %p78, %p79
    %p81 = scmp.le.s32.totalorder 1, %s7
    %p82 = scmp.lt.s32.totalorder %s7, 3
    %p83 = pnand %p81, %p82
    %p84 = pneg %p83
    // Predicated region
    $region9: #{sagamma_forward.2} parent=5 // pred_check
      _
    $region10: #{sagamma_forward.2} parent=5 // pred_check_branch
      %86 = sbr.rel (%p83) target = $region12
    $region11: #{sagamma_forward.2} parent=5 // pred_region
      %s87 = ssub.s32 %s7, 1
    $region12: #{sagamma_forward.2} parent=5 // pred_fallthru
      _
    %p88 = scmp.lt.s32.totalorder %s7, 2
    // Predicated region
    $region13: #{sagamma_forward.2} parent=5 // pred_check
      %p89 = pneg %p88
    $region14: #{sagamma_forward.2} parent=5 // pred_check_branch
      %91 = sbr.rel (%p89) target = $region16
    $region15: #{sagamma_forward.2} parent=5 // pred_region
      // Predicated region
      $region17: #{sagamma_forward.2} parent=15 // pred_check
        %p92 = pneg %p41
      $region18: #{sagamma_forward.2} parent=15 // pred_check_branch
        %94 = sbr.rel (%p92) target = $region20
      $region19: #{sagamma_forward.2} parent=15 // pred_region
        %s95 = smul.u32 2, %s15
        %p96 = scmp.lt.s32.totalorder %s14, 1
        %s97 = scalar_select %p96, %s14, 1
        %p98 = scmp.lt.s32.totalorder %s95, 1
        %s99 = scalar_select %p98, %s95, 1
        %s100 = smul.addr %s97, 2
        %s101 = sadd.s32 %s99, %s100
        %s102 = smul.addr %s101, 4
        %s103 = scalar_lea.vmem %s0, %s102
        %s104 = smul.u32 2, %s15
      $region20: #{sagamma_forward.2} parent=15 // pred_fallthru
        _
    $region16: #{sagamma_forward.2} parent=5 // pred_fallthru
      _
    %p105 = scmp.le.s32.totalorder 1, %s7
    %p106 = scmp.lt.s32.totalorder %s7, 3
    %p107 = pnand %p105, %p106
    %p108 = pneg %p107
    // Predicated region
    $region21: #{sagamma_forward.2} parent=5 // pred_check
      _
    $region22: #{sagamma_forward.2} parent=5 // pred_check_branch
      %110 = sbr.rel (%p107) target = $region24
    $region23: #{sagamma_forward.2} parent=5 // pred_region
      %s111 = ssub.s32 %s7, 1
      %s112 = smul.u32 2, %s17
      %p113 = scmp.lt.s32.totalorder %s16, 1
      %s114 = scalar_select %p113, %s16, 1
      %p115 = scmp.lt.s32.totalorder %s112, 1
      %s116 = scalar_select %p115, %s112, 1
      %s117 = smul.addr %s114, 2
      %s118 = sadd.s32 %s116, %s117
      %s119 = smul.addr %s118, 4
      %s120 = scalar_lea.vmem %s0, %s119
      %p121 = pneg %p47
      %p122 = pneg %p44
      %p123 = pneg %p73
      %p124 = pneg %p70
      %p125 = scmp.lt.s32.totalorder %s16, 1
      %s126 = scalar_select %p125, %s16, 1
      %s127 = scalar_lea.vmem %s1, %s126
      %s128 = smul.u32 2, %s17
      %p129 = scmp.lt.s32.totalorder %s16, 1
      %s130 = scalar_select %p129, %s16, 1
      %p131 = scmp.lt.s32.totalorder %s128, 1
      %s132 = scalar_select %p131, %s128, 1
      %s133 = smul.addr %s130, 2
      %s134 = sadd.s32 %s132, %s133
      %s135 = smul.addr %s134, 4
      %s136 = scalar_lea.vmem %s0, %s135
      %s137 = smul.u32 2, %s17
      %p138 = scmp.lt.s32.totalorder %s16, 1
      %s139 = scalar_select %p138, %s16, 1
      %s140 = scalar_lea.vmem %s1, %s139
      %p141 = scmp.eq.s32.totalorder %s17, 0
      // Predicated region
      $region25: #{sagamma_forward.2} parent=23 // pred_check
        %p142 = pneg %p141
      $region26: #{sagamma_forward.2} parent=23 // pred_check_branch
        %144 = sbr.rel (%p142) target = $region28
      $region27: #{sagamma_forward.2} parent=23 // pred_region
        %vm145 = vcmask 0
        %146 = vst.msk [vmem:[#allocation2] sm:$0x1] %vm145, 0.0
        %147 = vst.msk [vmem:[#allocation3] sm:$0x1] %vm145, 0.0
      $region28: #{sagamma_forward.2} parent=23 // pred_fallthru
        _
      %v148 = vld [vmem:[%s136] sm:$0xff]
      %v149 = vmul.f32 %v148, 0.299
      %v150 = vmul.f32 %v148, 0.587
      %v152 = vrot.slane %v150, 5
      %v153 = vrot.slane %v152, 4
      %v155 = vadd.f32 %v149, %v153
      %v156 = vmul.f32 %v148, 0.114
      %v158 = vrot.slane %v156, 6
      %v159 = vrot.slane %v158, 4
      %v161 = vadd.f32 %v155, %v159
      %v162 = vld [vmem:[#allocation2] sm:$0x1]
      %v164 = vlaneseq
      %v165 = vshrl.u32 %v164, 7
      %v166 = vsub.s32 0, %v165
      %v167 = vrot.slane %v161, %v166
      %v168 = vlaneseq
      %v169 = vshrl.u32 %v168, 7
      %v170 = vsub.s32 4, %v169
      %v171 = vrot.slane %v161, %v170
      %vm174 = vcmask 1040384
      %v175 = vsel %vm174, %v167, 0.0
      %v176 = vsel %vm174, %v171, 0.0
      %v177 = vadd.f32 %v175, %v176
      %178 = vadd.xlane.f32.xlu0 %v177
      %v179 = vpop.xlane.xlu0 %178
      %v180 = vadd.f32 %v162, %v179
      %vm181 = vcmask 0
      %182 = vst.msk [vmem:[#allocation2] sm:$0x1] %vm181, %v180
      %v183 = vld [vmem:[#allocation3] sm:$0x1]
      %v184 = vmul.f32 %v161, %v161
      %v186 = vlaneseq
      %v187 = vshrl.u32 %v186, 7
      %v188 = vsub.s32 0, %v187
      %v189 = vrot.slane %v184, %v188
      %v190 = vlaneseq
      %v191 = vshrl.u32 %v190, 7
      %v192 = vsub.s32 4, %v191
      %v193 = vrot.slane %v184, %v192
      %v196 = vsel %vm174, %v189, 0.0
      %v197 = vsel %vm174, %v193, 0.0
      %v198 = vadd.f32 %v196, %v197
      %199 = vadd.xlane.f32.xlu0 %v198
      %v200 = vpop.xlane.xlu0 %199
      %v201 = vadd.f32 %v183, %v200
      %202 = vst.msk [vmem:[#allocation3] sm:$0x1] %vm181, %v201
      // Predicated region
      $region29: #{sagamma_forward.2} parent=23 // pred_check
        %p203 = pneg %p141
      $region30: #{sagamma_forward.2} parent=23 // pred_check_branch
        %205 = sbr.rel (%p203) target = $region32
      $region31: #{sagamma_forward.2} parent=23 // pred_region
        %v206 = vld [vmem:[#allocation2] sm:$0x1]
        %v207 = vld [vmem:[#allocation3] sm:$0x1]
        %v208 = vmul.f32 %v206, 0.00390625
        %v209 = vmul.f32 %v206, %v208
        %v210 = vsub.f32 %v207, %v209
        %v211 = vmul.f32 %v210, 0.003921569
        %v212 = vmax.f32 %v211, 0.0
        %v213 = vrsqrt.pop %v212
        %v214 = vmul.f32 %v212, %v213
        %vm215 = vcmp.eq.f32.partialorder %v212, inf
        %v216 = vsel %vm215, %v212, %v214
        %vm217 = vcmp.eq.f32.partialorder %v212, 0.0
        %v218 = vand.u32 %v212, 2147483648
        %v219 = vsel %vm217, %v218, %v216
        %v220 = vmax.f32 %v219, 1e-06
        %v221 = vmul.f32 %v208, 0.4
        %v222 = vadd.f32 %v208, %v220
        %v223 = vrcp.pop %v222
        %v224 = vmul.f32 %v221, %v223
        %v225 = vadd.f32 %v224, 0.8
        %v226 = vmax.f32 %v225, 0.8
        %v227 = vmin.f32 %v226, 1.2
        %vm228 = vcmp.ne.f32.partialorder %v227, %v227
        %v229 = vsel %vm228, 0.8, %v227
        %230 = vst.msk [vmem:[%s140] sm:$0x1] %vm181, %v229
      $region32: #{sagamma_forward.2} parent=23 // pred_fallthru
        _
      %p231 = scmp.lt.s32.totalorder %s16, 1
      %s232 = scalar_select %p231, %s16, 1
      %s233 = scalar_lea.vmem %s1, %s232
      // Predicated region
      $region33: #{sagamma_forward.2} parent=23 // pred_check
        %p234 = pneg %p70
      $region34: #{sagamma_forward.2} parent=23 // pred_check_branch
        %236 = sbr.rel (%p234) target = $region36
      $region35: #{sagamma_forward.2} parent=23 // pred_region
        _
      $region36: #{sagamma_forward.2} parent=23 // pred_fallthru
        _
    $region24: #{sagamma_forward.2} parent=5 // pred_fallthru
      _
    %p237 = scmp.le.s32.totalorder 2, %s7
    // Predicated region
    $region37: #{sagamma_forward.2} parent=5 // pred_check
      %p238 = pneg %p237
    $region38: #{sagamma_forward.2} parent=5 // pred_check_branch
      %240 = sbr.rel (%p238) target = $region40
    $region39: #{sagamma_forward.2} parent=5 // pred_region
      %s241 = ssub.s32 %s7, 2
      // Predicated region
      $region41: #{sagamma_forward.2} parent=39 // pred_check
        %p242 = pneg %p76
      $region42: #{sagamma_forward.2} parent=39 // pred_check_branch
        %244 = sbr.rel (%p242) target = $region44
      $region43: #{sagamma_forward.2} parent=39 // pred_region
        %p245 = scmp.lt.s32.totalorder %s18, 1
        %s246 = scalar_select %p245, %s18, 1
        %s247 = scalar_lea.vmem %s1, %s246
      $region44: #{sagamma_forward.2} parent=39 // pred_fallthru
        _
    $region40: #{sagamma_forward.2} parent=5 // pred_fallthru
      _
  $region6: #{sagamma_forward.2} parent=0 // loop_footer
    %s11 = sadd.s32 1, %s7
  $region7: #{sagamma_forward.2} parent=0 // loop_footer_branch
    %6 = sbr.rel target = $region3
  $region8: #{sagamma_forward.2} parent=0 // loop_exit
    _

</llo_original>
